<compile_context>
chip_gen: v7x
topology: tpu7x:2x2x1
jax: 0.10.0
libtpu: 0.0.40
codegen_flags: <defaults>
</compile_context>

<pallas_src>
import functools
import math

import jax
import jax.numpy as jnp
from jax.experimental import pallas as pl
from jax.experimental.pallas import tpu as pltpu


def critic_kernel(xa_ref, w1_ref, b1_ref, w2_ref, b2_ref, w3_ref, b3_ref,
                  out_ref, *, state_size):
    xa = xa_ref[...]                                        # (TILE_B, S+A)

    # torch.clamp(x, -1.1, 1.1) applies to the state columns only (the action
    # columns pass through untouched).  Column mask keeps the single fused
    # input stream while preserving the original semantics.
    col = jax.lax.broadcasted_iota(jnp.int32, xa.shape, 1)
    xa = jnp.where(col < state_size, jnp.clip(xa, -1.1, 1.1), xa)

    # layer 1: cat([x, a]) @ W1 + b1, ReLU   (single MXU matmul, f32 accum)
    h1 = jnp.dot(xa, w1_ref[...], preferred_element_type=jnp.float32) + b1_ref[...]
    h1 = jnp.maximum(h1, 0.0)

    # layer 2: H -> H, ReLU
    h2 = jnp.dot(h1, w2_ref[...], preferred_element_type=jnp.float32) + b2_ref[...]
    h2 = jnp.maximum(h2, 0.0)

    # output layer H -> 1: VPU multiply + XLU reduce instead of a wasteful
    # (TILE_B, H) @ (H, 1) MXU pass; the (1, TILE_B) result is lane-dense so
    # the store is an unmasked vst.
    h2t = jnp.transpose(h2)                                 # (H, TILE_B)  XLU
    q = jnp.sum(h2t * w3_ref[...], axis=0, keepdims=True)   # (1, TILE_B)
    out_ref[...] = q + b3_ref[...]


def _round_up(n, m):
    return ((n + m - 1) // m) * m


def critic_forward(x, a, params, *, tile_b=2048):
    """x: (B, S) float32, a: (B, A) float32 -> (B, 1) float32."""
    w1, b1, w2, b2, w3, b3 = params
    B, S = x.shape
    A = a.shape[1]
    F = S + A
    H = w1.shape[1]

    # One fused input stream: cat([x, a], dim=1).  (clamp stays in-kernel.)
    xa = jnp.concatenate([x, a], axis=1)                    # (B, S+A)

    # Lane-dense, 128-aligned batch tiles; don't over-pad tiny batches.
    tile_b = max(128, min(_round_up(tile_b, 128), _round_up(B, 128)))
    b_pad = _round_up(B, tile_b)
    if b_pad != B:
        xa = jnp.pad(xa, ((0, b_pad - B), (0, 0)))
    grid = (b_pad // tile_b,)

    const = lambda i: (0, 0)  # weights/biases: DMA'd once, VMEM-resident

    cost = pl.CostEstimate(
        flops=2 * b_pad * (F * H + H * H + H),
        transcendentals=0,
        bytes_accessed=4 * (xa.size + b_pad + w1.size + b1.size
                            + w2.size + b2.size + w3.size + b3.size),
    )

    out = pl.pallas_call(
        functools.partial(critic_kernel, state_size=S),
        out_shape=jax.ShapeDtypeStruct((1, b_pad), jnp.float32),
        grid=grid,
        in_specs=[
            pl.BlockSpec((tile_b, F), lambda i: (i, 0)),    # xa: streamed tiles
            pl.BlockSpec((F, H), const),                    # W1
            pl.BlockSpec((1, H), const),                    # b1
            pl.BlockSpec((H, H), const),                    # W2
            pl.BlockSpec((1, H), const),                    # b2
            pl.BlockSpec((H, 1), const),                    # w3 (column)
            pl.BlockSpec((1, 1), const),                    # b3
        ],
        out_specs=pl.BlockSpec((1, tile_b), lambda i: (0, i)),
        compiler_params=pltpu.CompilerParams(
            dimension_semantics=("parallel",),              # megacore on v7x
        ),
        cost_estimate=cost,
    )(xa, w1, b1, w2, b2, w3, b3)

    return out[0, :B].reshape(B, 1)


def init_params(key, state_size, action_size, hidden_size):
    """Deterministic init mimicking nn.Linear's U(-1/sqrt(fan_in), 1/sqrt(fan_in)).
    Weights are stored transposed as (in_features, out_features)."""
    ks = jax.random.split(key, 6)
    fan1 = state_size + action_size
    lim1 = 1.0 / math.sqrt(fan1)
    lim2 = 1.0 / math.sqrt(hidden_size)

    w1 = jax.random.uniform(ks[0], (fan1, hidden_size), jnp.float32, -lim1, lim1)
    b1 = jax.random.uniform(ks[1], (1, hidden_size), jnp.float32, -lim1, lim1)
    w2 = jax.random.uniform(ks[2], (hidden_size, hidden_size), jnp.float32, -lim2, lim2)
    b2 = jax.random.uniform(ks[3], (1, hidden_size), jnp.float32, -lim2, lim2)
    w3 = jax.random.uniform(ks[4], (hidden_size, 1), jnp.float32, -lim2, lim2)
    b3 = jax.random.uniform(ks[5], (1, 1), jnp.float32, -lim2, lim2)
    return (w1, b1, w2, b2, w3, b3)


def critic_reference(x, a, params):
    """Pure-JAX reference of the PyTorch forward for sanity checking."""
    w1, b1, w2, b2, w3, b3 = params
    xa = jnp.concatenate([jnp.clip(x, -1.1, 1.1), a], axis=1)
    h1 = jax.nn.relu(xa @ w1 + b1)
    h2 = jax.nn.relu(h1 @ w2 + b2)
    return h2 @ w3 + b3


if __name__ == "__main__":
    state_size, action_size, hidden_size = 8, 4, 32
    batch = 2

    key = jax.random.PRNGKey(0)
    k_x, k_a, k_p = jax.random.split(key, 3)

    x = jax.random.normal(k_x, (batch, state_size), jnp.float32) * 2.0  # exercise clamp
    a = jax.random.normal(k_a, (batch, action_size), jnp.float32)
    params = init_params(k_p, state_size, action_size, hidden_size)

    q = critic_forward(x, a, params)
    jax.block_until_ready(q)

    q_ref = critic_reference(x, a, params)
    assert q.shape == (batch, 1)
    assert jnp.allclose(q, q_ref, atol=1e-4, rtol=1e-4), (q, q_ref)

    print("KERNEL_OK")
</pallas_src>

<mosaic_0001>
module attributes {stable_mosaic.version = 11 : i64} {
  func.func @critic_kernel(%arg0: i32, %arg1: memref<128x12xf32, #tpu.memory_space<vmem>>, %arg2: memref<12x32xf32, #tpu.memory_space<vmem>>, %arg3: memref<1x32xf32, #tpu.memory_space<vmem>>, %arg4: memref<32x32xf32, #tpu.memory_space<vmem>>, %arg5: memref<1x32xf32, #tpu.memory_space<vmem>>, %arg6: memref<32x1xf32, #tpu.memory_space<vmem>>, %arg7: memref<1x1xf32, #tpu.memory_space<vmem>>, %arg8: memref<1x128xf32, #tpu.memory_space<vmem>>) attributes {dimension_semantics = [#tpu.dimension_semantics<parallel>], iteration_bounds = array<i64: 1>, scalar_prefetch = 0 : i64, scratch_operands = 0 : i64, tpu.core_type = #tpu.core_type<tc>, window_params = [{transform_indices = @transform_0, window_bounds = array<i64: 128, 12>}, {pipeline_mode = #tpu.pipeline_mode<synchronous>, transform_indices = @transform_1, window_bounds = array<i64: 12, 32>}, {pipeline_mode = #tpu.pipeline_mode<synchronous>, transform_indices = @transform_2, window_bounds = array<i64: 1, 32>}, {pipeline_mode = #tpu.pipeline_mode<synchronous>, transform_indices = @transform_3, window_bounds = array<i64: 32, 32>}, {pipeline_mode = #tpu.pipeline_mode<synchronous>, transform_indices = @transform_4, window_bounds = array<i64: 1, 32>}, {pipeline_mode = #tpu.pipeline_mode<synchronous>, transform_indices = @transform_5, window_bounds = array<i64: 32, 1>}, {pipeline_mode = #tpu.pipeline_mode<synchronous>, transform_indices = @transform_6, window_bounds = array<i64: 1, 1>}, {transform_indices = @transform_7, window_bounds = array<i64: 1, 128>}]} {
    %c0 = arith.constant 0 : index
    %c0_0 = arith.constant 0 : index
    %0 = vector.load %arg1[%c0, %c0_0] : memref<128x12xf32, #tpu.memory_space<vmem>>, vector<128x12xf32>
    %1 = tpu.iota {dimensions = array<i32: 1>} : vector<128x12xi32>
    %c8_i32 = arith.constant 8 : i32
    %2 = vector.broadcast %c8_i32 : i32 to vector<128x12xi32>
    %3 = arith.cmpi slt, %1, %2 : vector<128x12xi32>
    %cst = arith.constant -1.100000e+00 : f32
    %cst_1 = arith.constant 1.100000e+00 : f32
    %4 = vector.broadcast %cst : f32 to vector<128x12xf32>
    %5 = arith.maximumf %4, %0 : vector<128x12xf32>
    %6 = vector.broadcast %cst_1 : f32 to vector<128x12xf32>
    %7 = arith.minimumf %6, %5 : vector<128x12xf32>
    %8 = arith.select %3, %7, %0 : vector<128x12xi1>, vector<128x12xf32>
    %c0_2 = arith.constant 0 : index
    %c0_3 = arith.constant 0 : index
    %9 = vector.load %arg2[%c0_2, %c0_3] : memref<12x32xf32, #tpu.memory_space<vmem>>, vector<12x32xf32>
    %cst_4 = arith.constant dense<0.000000e+00> : vector<128x32xf32>
    %10 = tpu.matmul %8, %9, %cst_4 {dimension_numbers = #tpu.dot_dimension_numbers<[1], [0], [0], [1], [0, 0, 1, 1], [], []>} : vector<128x12xf32>, vector<12x32xf32>, vector<128x32xf32> -> vector<128x32xf32>
    %c0_5 = arith.constant 0 : index
    %c0_6 = arith.constant 0 : index
    %11 = vector.load %arg3[%c0_5, %c0_6] : memref<1x32xf32, #tpu.memory_space<vmem>>, vector<1x32xf32>
    %12 = vector.broadcast %11 : vector<1x32xf32> to vector<128x32xf32>
    %13 = arith.addf %10, %12 : vector<128x32xf32>
    %cst_7 = arith.constant 0.000000e+00 : f32
    %14 = vector.broadcast %cst_7 : f32 to vector<128x32xf32>
    %15 = arith.maximumf %13, %14 : vector<128x32xf32>
    %c0_8 = arith.constant 0 : index
    %c0_9 = arith.constant 0 : index
    %16 = vector.load %arg4[%c0_8, %c0_9] : memref<32x32xf32, #tpu.memory_space<vmem>>, vector<32x32xf32>
    %cst_10 = arith.constant dense<0.000000e+00> : vector<128x32xf32>
    %17 = tpu.matmul %15, %16, %cst_10 {dimension_numbers = #tpu.dot_dimension_numbers<[1], [0], [0], [1], [0, 0, 1, 1], [], []>} : vector<128x32xf32>, vector<32x32xf32>, vector<128x32xf32> -> vector<128x32xf32>
    %c0_11 = arith.constant 0 : index
    %c0_12 = arith.constant 0 : index
    %18 = vector.load %arg5[%c0_11, %c0_12] : memref<1x32xf32, #tpu.memory_space<vmem>>, vector<1x32xf32>
    %19 = vector.broadcast %18 : vector<1x32xf32> to vector<128x32xf32>
    %20 = arith.addf %17, %19 : vector<128x32xf32>
    %cst_13 = arith.constant 0.000000e+00 : f32
    %21 = vector.broadcast %cst_13 : f32 to vector<128x32xf32>
    %22 = arith.maximumf %20, %21 : vector<128x32xf32>
    %23 = tpu.transpose %22, [1, 0] : vector<128x32xf32> -> vector<32x128xf32>
    %c0_14 = arith.constant 0 : index
    %c0_15 = arith.constant 0 : index
    %24 = vector.load %arg6[%c0_14, %c0_15] : memref<32x1xf32, #tpu.memory_space<vmem>>, vector<32x1xf32>
    %25 = vector.broadcast %24 : vector<32x1xf32> to vector<32x128xf32>
    %26 = arith.mulf %23, %25 : vector<32x128xf32>
    %cst_16 = arith.constant dense<0.000000e+00> : vector<128xf32>
    %27 = vector.multi_reduction <add>, %26, %cst_16 [0] : vector<32x128xf32> to vector<128xf32>
    %28 = vector.shape_cast %27 : vector<128xf32> to vector<1x128xf32>
    %c0_17 = arith.constant 0 : index
    %c0_18 = arith.constant 0 : index
    %29 = vector.load %arg7[%c0_17, %c0_18] : memref<1x1xf32, #tpu.memory_space<vmem>>, vector<1x1xf32>
    %30 = vector.broadcast %29 : vector<1x1xf32> to vector<1x128xf32>
    %31 = arith.addf %28, %30 : vector<1x128xf32>
    %c0_19 = arith.constant 0 : index
    %c0_20 = arith.constant 0 : index
    %32 = vector.load %arg8[%c0_19, %c0_20] : memref<1x128xf32, #tpu.memory_space<vmem>>, vector<1x128xf32>
    tpu.vector_store %arg8[%c0_19, %c0_20], %31 {strides = array<i32>} : memref<1x128xf32, #tpu.memory_space<vmem>>, vector<1x128xf32>,
    return
  }
  func.func @transform_0(%arg0: i32) -> (i32, i32) {
    %c0_i32 = arith.constant 0 : i32
    %c0_i32_0 = arith.constant 0 : i32
    return %arg0, %c0_i32 : i32, i32
  }
  func.func @transform_1(%arg0: i32) -> (i32, i32) {
    %c0_i32 = arith.constant 0 : i32
    %c0_i32_0 = arith.constant 0 : i32
    %c0_i32_1 = arith.constant 0 : i32
    return %c0_i32, %c0_i32_0 : i32, i32
  }
  func.func @transform_2(%arg0: i32) -> (i32, i32) {
    %c0_i32 = arith.constant 0 : i32
    %c0_i32_0 = arith.constant 0 : i32
    %c0_i32_1 = arith.constant 0 : i32
    return %c0_i32, %c0_i32_0 : i32, i32
  }
  func.func @transform_3(%arg0: i32) -> (i32, i32) {
    %c0_i32 = arith.constant 0 : i32
    %c0_i32_0 = arith.constant 0 : i32
    %c0_i32_1 = arith.constant 0 : i32
    return %c0_i32, %c0_i32_0 : i32, i32
  }
  func.func @transform_4(%arg0: i32) -> (i32, i32) {
    %c0_i32 = arith.constant 0 : i32
    %c0_i32_0 = arith.constant 0 : i32
    %c0_i32_1 = arith.constant 0 : i32
    return %c0_i32, %c0_i32_0 : i32, i32
  }
  func.func @transform_5(%arg0: i32) -> (i32, i32) {
    %c0_i32 = arith.constant 0 : i32
    %c0_i32_0 = arith.constant 0 : i32
    %c0_i32_1 = arith.constant 0 : i32
    return %c0_i32, %c0_i32_0 : i32, i32
  }
  func.func @transform_6(%arg0: i32) -> (i32, i32) {
    %c0_i32 = arith.constant 0 : i32
    %c0_i32_0 = arith.constant 0 : i32
    %c0_i32_1 = arith.constant 0 : i32
    return %c0_i32, %c0_i32_0 : i32, i32
  }
  func.func @transform_7(%arg0: i32) -> (i32, i32) {
    %c0_i32 = arith.constant 0 : i32
    %c0_i32_0 = arith.constant 0 : i32
    return %c0_i32, %arg0 : i32, i32
  }
}

</mosaic_0001>

<llo_original>
// kernel: tpu_custom_call.1
$region0: #{tpu_custom_call.1}
  #allocation0 [shape = 'u32[]', space=smem, size = 0x4, offset = 0x4, fixed_abs, tag = 'smem constant byte address 0x4 - core index']
  #allocation1 [shape = 'u32[144,128]{1,0:T(1,128)}', space=vmem, size = 0x12000, scoped, tag = 'internal scratch']
  #allocation2 [shape = 'f32[1,1]{1,0:T(1,128)S(1)}', space=vmem, size = 0x200, scoped, tag = 'scoped memory for tpu_custom_call.1']
  %s0 = inlined_call_operand.vmem [shape: f32[128,12], index: 0, kind: input, shape index: {}]
  %s1 = inlined_call_operand.vmem [shape: f32[12,32], index: 1, kind: input, shape index: {}]
  %s2 = inlined_call_operand.vmem [shape: f32[1,32], index: 2, kind: input, shape index: {}]
  %s3 = inlined_call_operand.vmem [shape: f32[32,32], index: 3, kind: input, shape index: {}]
  %s4 = inlined_call_operand.vmem [shape: f32[1,32], index: 4, kind: input, shape index: {}]
  %s5 = inlined_call_operand.vmem [shape: f32[32,1], index: 5, kind: input, shape index: {}]
  %s6 = inlined_call_operand.<no memory space> [shape: f32[1,1], index: 6, kind: input, shape index: {}]
  %s7 = inlined_call_operand.hbm [shape: f32[1,128], index: 7, kind: output, shape index: {}]
  %s8 = sld [smem:[#allocation0]]
  $region38: #{tpu_custom_call.1} parent=0
    _
  %s10 = ssub.s32 1, %s8
  %s11 = scalar_select 0, %s10, %s8
  %v12 = vstv %s6
  %13 = vst [vmem:[#allocation2] sm:$0x1] %v12
  $region1: #{tpu_custom_call.1} parent=0
    #allocation3 [shape = 'u8[512]{0}', space=vmem, size = 0x400, scoped, tag = 'output window, operand 0, single buffered']
    #allocation4 [shape = 's32[1]{0}', space=sflag, size = 0x4, scoped, tag = 'scoped memory for tpu_custom_call.1']
    %14 = vsyncpa [#allocation4], 0
    // Predicated region
    $region2: #{tpu_custom_call.1} parent=1 // pred_check
      _
    $region3: #{tpu_custom_call.1} parent=1 // pred_check_branch
      %16 = sbr.rel (0) target = $region5
    $region4: #{tpu_custom_call.1} parent=1 // pred_region
      _
    $region5: #{tpu_custom_call.1} parent=1 // pred_fallthru
      _
    // Predicated region
    $region6: #{tpu_custom_call.1} parent=1 // pred_check
      _
    $region7: #{tpu_custom_call.1} parent=1 // pred_check_branch
      %18 = sbr.rel (0) target = $region9
    $region8: #{tpu_custom_call.1} parent=1 // pred_region
      _
    $region9: #{tpu_custom_call.1} parent=1 // pred_fallthru
      _
    // Predicated region
    $region10: #{tpu_custom_call.1} parent=1 // pred_check
      _
    $region11: #{tpu_custom_call.1} parent=1 // pred_check_branch
      %20 = sbr.rel (0) target = $region13
    $region12: #{tpu_custom_call.1} parent=1 // pred_region
      _
    $region13: #{tpu_custom_call.1} parent=1 // pred_fallthru
      _
    // Predicated region
    $region14: #{tpu_custom_call.1} parent=1 // pred_check
      _
    $region15: #{tpu_custom_call.1} parent=1 // pred_check_branch
      %22 = sbr.rel (0) target = $region17
    $region16: #{tpu_custom_call.1} parent=1 // pred_region
      _
    $region17: #{tpu_custom_call.1} parent=1 // pred_fallthru
      _
    // Predicated region
    $region18: #{tpu_custom_call.1} parent=1 // pred_check
      _
    $region19: #{tpu_custom_call.1} parent=1 // pred_check_branch
      %24 = sbr.rel (0) target = $region21
    $region20: #{tpu_custom_call.1} parent=1 // pred_region
      _
    $region21: #{tpu_custom_call.1} parent=1 // pred_fallthru
      _
    // Predicated region
    $region22: #{tpu_custom_call.1} parent=1 // pred_check
      _
    $region23: #{tpu_custom_call.1} parent=1 // pred_check_branch
      %26 = sbr.rel (0) target = $region25
    $region24: #{tpu_custom_call.1} parent=1 // pred_region
      _
    $region25: #{tpu_custom_call.1} parent=1 // pred_fallthru
      _
    // Predicated region
    $region26: #{tpu_custom_call.1} parent=1 // pred_check
      _
    $region27: #{tpu_custom_call.1} parent=1 // pred_check_branch
      %28 = sbr.rel (0) target = $region29
    $region28: #{tpu_custom_call.1} parent=1 // pred_region
      _
    $region29: #{tpu_custom_call.1} parent=1 // pred_fallthru
      _
    %v29 = vld [vmem:[%s0] sm:$0xff]
    %v30 = vld [vmem:[%s0 + $0x8] sm:$0xff]
    %v31 = vld [vmem:[%s0 + $0x10] sm:$0xff]
    %v32 = vld [vmem:[%s0 + $0x18] sm:$0xff]
    %v33 = vld [vmem:[%s0 + $0x20] sm:$0xff]
    %v34 = vld [vmem:[%s0 + $0x28] sm:$0xff]
    %v35 = vld [vmem:[%s0 + $0x30] sm:$0xff]
    %v36 = vld [vmem:[%s0 + $0x38] sm:$0xff]
    %v37 = vld [vmem:[%s0 + $0x40] sm:$0xff]
    %v38 = vld [vmem:[%s0 + $0x48] sm:$0xff]
    %v39 = vld [vmem:[%s0 + $0x50] sm:$0xff]
    %v40 = vld [vmem:[%s0 + $0x58] sm:$0xff]
    %v41 = vld [vmem:[%s0 + $0x60] sm:$0xff]
    %v42 = vld [vmem:[%s0 + $0x68] sm:$0xff]
    %v43 = vld [vmem:[%s0 + $0x70] sm:$0xff]
    %v44 = vld [vmem:[%s0 + $0x78] sm:$0xff]
    %v45 = vlaneseq
    %v46 = vand.u32 %v45, 127
    %vm47 = vcmp.lt.s32.totalorder %v46, 8
    %v48 = vmax.f32 %v29, -1.1
    %v49 = vmax.f32 %v30, -1.1
    %v50 = vmax.f32 %v31, -1.1
    %v51 = vmax.f32 %v32, -1.1
    %v52 = vmax.f32 %v33, -1.1
    %v53 = vmax.f32 %v34, -1.1
    %v54 = vmax.f32 %v35, -1.1
    %v55 = vmax.f32 %v36, -1.1
    %v56 = vmax.f32 %v37, -1.1
    %v57 = vmax.f32 %v38, -1.1
    %v58 = vmax.f32 %v39, -1.1
    %v59 = vmax.f32 %v40, -1.1
    %v60 = vmax.f32 %v41, -1.1
    %v61 = vmax.f32 %v42, -1.1
    %v62 = vmax.f32 %v43, -1.1
    %v63 = vmax.f32 %v44, -1.1
    %v64 = vmin.f32 %v48, 1.1
    %v65 = vmin.f32 %v49, 1.1
    %v66 = vmin.f32 %v50, 1.1
    %v67 = vmin.f32 %v51, 1.1
    %v68 = vmin.f32 %v52, 1.1
    %v69 = vmin.f32 %v53, 1.1
    %v70 = vmin.f32 %v54, 1.1
    %v71 = vmin.f32 %v55, 1.1
    %v72 = vmin.f32 %v56, 1.1
    %v73 = vmin.f32 %v57, 1.1
    %v74 = vmin.f32 %v58, 1.1
    %v75 = vmin.f32 %v59, 1.1
    %v76 = vmin.f32 %v60, 1.1
    %v77 = vmin.f32 %v61, 1.1
    %v78 = vmin.f32 %v62, 1.1
    %v79 = vmin.f32 %v63, 1.1
    %v80 = vsel %vm47, %v64, %v29
    %v81 = vsel %vm47, %v65, %v30
    %v82 = vsel %vm47, %v66, %v31
    %v83 = vsel %vm47, %v67, %v32
    %v84 = vsel %vm47, %v68, %v33
    %v85 = vsel %vm47, %v69, %v34
    %v86 = vsel %vm47, %v70, %v35
    %v87 = vsel %vm47, %v71, %v36
    %v88 = vsel %vm47, %v72, %v37
    %v89 = vsel %vm47, %v73, %v38
    %v90 = vsel %vm47, %v74, %v39
    %v91 = vsel %vm47, %v75, %v40
    %v92 = vsel %vm47, %v76, %v41
    %v93 = vsel %vm47, %v77, %v42
    %v94 = vsel %vm47, %v78, %v43
    %v95 = vsel %vm47, %v79, %v44
    %v96 = vld [vmem:[%s1] sm:$0xff]
    %v97 = vld [vmem:[%s1 + $0x8] sm:$0xf]
    %v98 = vld [vmem:[%s2] sm:$0x1]
    %v100 = vlaneseq
    %v101 = vshrl.u32 %v100, 7
    %v102 = vsub.s32 0, %v101
    %v103 = vrot.slane %v98, %v102
    %vm105 = vcmask 97280
    %v107 = vsel %vm105, %v80, 0
    %v110 = vsel %vm105, %v81, 0
    %v113 = vsel %vm105, %v82, 0
    %v116 = vsel %vm105, %v83, 0
    %v119 = vsel %vm105, %v84, 0
    %v122 = vsel %vm105, %v85, 0
    %v125 = vsel %vm105, %v86, 0
    %v128 = vsel %vm105, %v87, 0
    %v131 = vsel %vm105, %v88, 0
    %v134 = vsel %vm105, %v89, 0
    %v137 = vsel %vm105, %v90, 0
    %v140 = vsel %vm105, %v91, 0
    %v143 = vsel %vm105, %v92, 0
    %v146 = vsel %vm105, %v93, 0
    %v149 = vsel %vm105, %v94, 0
    %v152 = vsel %vm105, %v95, 0
    %vm154 = vcmask 1043456
    %v156 = vsel %vm154, %v97, 0
    %158 = vmatprep.subr.mxu0 0.0
    %159 = vmatpush1.msra.mxu0 %v96
    %160 = vmatprep.subr.mxu0 0.0
    %161 = vmatpush1.msra.mxu0 %v156
    %162 = vmatprep.subr.mxu0 0.0
    %163 = vmatpush1.msra.mxu0 0.0
    %164 = vmatprep.subr.mxu0 0.0
    %165 = vmatpush1.msra.mxu0 0.0
    %166 = vmatprep.subr.mxu0 0.0
    %167 = vmatpush1.msra.mxu0 0.0
    %168 = vmatprep.subr.mxu0 0.0
    %169 = vmatpush1.msra.mxu0 0.0
    %170 = vmatprep.subr.mxu0 0.0
    %171 = vmatpush1.msra.mxu0 0.0
    %172 = vmatprep.subr.mxu0 0.0
    %173 = vmatpush1.msra.mxu0 0.0
    %174 = vmatprep.subr.mxu0 0.0
    %175 = vmatpush1.msra.mxu0 0.0
    %176 = vmatprep.subr.mxu0 0.0
    %177 = vmatpush1.msra.mxu0 0.0
    %178 = vmatprep.subr.mxu0 0.0
    %179 = vmatpush1.msra.mxu0 0.0
    %180 = vmatprep.subr.mxu0 0.0
    %181 = vmatpush1.msra.mxu0 0.0
    %182 = vmatprep.subr.mxu0 0.0
    %183 = vmatpush1.msra.mxu0 0.0
    %184 = vmatprep.subr.mxu0 0.0
    %185 = vmatpush1.msra.mxu0 0.0
    %186 = vmatprep.subr.mxu0 0.0
    %187 = vmatpush1.msra.mxu0 0.0
    %188 = vmatprep.subr.mxu0 0.0
    %189 = vmatpush1.msra.mxu0 0.0
    %190 = vmatprep.subr.mxu0 0.0
    %191 = vmatpush1.msra.mxu0 0.0
    %192 = vmatprep.subr.mxu0 0.0
    %193 = vmatpush1.msra.mxu0 0.0
    %194 = vmatprep.subr.mxu0 0.0
    %195 = vmatpush1.msra.mxu0 0.0
    %196 = vmatprep.subr.mxu0 0.0
    %197 = vmatpush1.msra.mxu0 0.0
    %198 = vmatprep.subr.mxu0 0.0
    %199 = vmatpush1.msra.mxu0 0.0
    %200 = vmatprep.subr.mxu0 0.0
    %201 = vmatpush1.msra.mxu0 0.0
    %202 = vmatprep.subr.mxu0 0.0
    %203 = vmatpush1.msra.mxu0 0.0
    %204 = vmatprep.subr.mxu0 0.0
    %205 = vmatpush1.msra.mxu0 0.0
    %206 = vmatprep.subr.mxu0 0.0
    %207 = vmatpush1.msra.mxu0 0.0
    %208 = vmatprep.subr.mxu0 0.0
    %209 = vmatpush1.msra.mxu0 0.0
    %210 = vmatprep.subr.mxu0 0.0
    %211 = vmatpush1.msra.mxu0 0.0
    %212 = vmatprep.subr.mxu0 0.0
    %213 = vmatpush1.msra.mxu0 0.0
    %214 = vmatprep.subr.mxu0 0.0
    %215 = vmatpush1.msra.mxu0 0.0
    %216 = vmatprep.subr.mxu0 0.0
    %217 = vmatpush1.msra.mxu0 0.0
    %218 = vmatprep.subr.mxu0 0.0
    %219 = vmatpush1.msra.mxu0 0.0
    %220 = vmatprep.subr.mxu0 0.0
    %221 = vmatpush1.msra.mxu0 0.0
    %222 = vmatprep.mubr.f32.mxu0 0.0
    %223 = vmatmul.mubr.f32.gmra.mrb[0].mxu0 %v107
    %v224 = vpop.f32.mrb[0].mxu0
    %v225 = vadd.f32 %v103, %v224
    %v226 = vpop.f32.mrb[0].mxu0
    %227 = vmatprep.mubr.f32.mxu0 0.0
    %228 = vmatmul.mubr.f32.gmra.mrb[0].mxu0 %v110
    %v229 = vpop.f32.mrb[0].mxu0
    %v230 = vadd.f32 %v103, %v229
    %v231 = vpop.f32.mrb[0].mxu0
    %232 = vmatprep.mubr.f32.mxu0 0.0
    %233 = vmatmul.mubr.f32.gmra.mrb[0].mxu0 %v113
    %v234 = vpop.f32.mrb[0].mxu0
    %v235 = vadd.f32 %v103, %v234
    %v236 = vpop.f32.mrb[0].mxu0
    %237 = vmatprep.mubr.f32.mxu0 0.0
    %238 = vmatmul.mubr.f32.gmra.mrb[0].mxu0 %v116
    %v239 = vpop.f32.mrb[0].mxu0
    %v240 = vadd.f32 %v103, %v239
    %v241 = vpop.f32.mrb[0].mxu0
    %242 = vmatprep.mubr.f32.mxu0 0.0
    %243 = vmatmul.mubr.f32.gmra.mrb[0].mxu0 %v119
    %v244 = vpop.f32.mrb[0].mxu0
    %v245 = vadd.f32 %v103, %v244
    %v246 = vpop.f32.mrb[0].mxu0
    %247 = vmatprep.mubr.f32.mxu0 0.0
    %248 = vmatmul.mubr.f32.gmra.mrb[0].mxu0 %v122
    %v249 = vpop.f32.mrb[0].mxu0
    %v250 = vadd.f32 %v103, %v249
    %v251 = vpop.f32.mrb[0].mxu0
    %252 = vmatprep.mubr.f32.mxu0 0.0
    %253 = vmatmul.mubr.f32.gmra.mrb[0].mxu0 %v125
    %v254 = vpop.f32.mrb[0].mxu0
    %v255 = vadd.f32 %v103, %v254
    %v256 = vpop.f32.mrb[0].mxu0
    %257 = vmatprep.mubr.f32.mxu0 0.0
    %258 = vmatmul.mubr.f32.gmra.mrb[0].mxu0 %v128
    %v259 = vpop.f32.mrb[0].mxu0
    %v260 = vadd.f32 %v103, %v259
    %v261 = vpop.f32.mrb[0].mxu0
    %262 = vmatprep.mubr.f32.mxu0 0.0
    %263 = vmatmul.mubr.f32.gmra.mrb[0].mxu0 %v131
    %v264 = vpop.f32.mrb[0].mxu0
    %v265 = vadd.f32 %v103, %v264
    %v266 = vpop.f32.mrb[0].mxu0
    %267 = vmatprep.mubr.f32.mxu0 0.0
    %268 = vmatmul.mubr.f32.gmra.mrb[0].mxu0 %v134
    %v269 = vpop.f32.mrb[0].mxu0
    %v270 = vadd.f32 %v103, %v269
    %v271 = vpop.f32.mrb[0].mxu0
    %272 = vmatprep.mubr.f32.mxu0 0.0
    %273 = vmatmul.mubr.f32.gmra.mrb[0].mxu0 %v137
    %v274 = vpop.f32.mrb[0].mxu0
    %v275 = vadd.f32 %v103, %v274
    %v276 = vpop.f32.mrb[0].mxu0
    %277 = vmatprep.mubr.f32.mxu0 0.0
    %278 = vmatmul.mubr.f32.gmra.mrb[0].mxu0 %v140
    %v279 = vpop.f32.mrb[0].mxu0
    %v280 = vadd.f32 %v103, %v279
    %v281 = vpop.f32.mrb[0].mxu0
    %282 = vmatprep.mubr.f32.mxu0 0.0
    %283 = vmatmul.mubr.f32.gmra.mrb[0].mxu0 %v143
    %v284 = vpop.f32.mrb[0].mxu0
    %v285 = vadd.f32 %v103, %v284
    %v286 = vpop.f32.mrb[0].mxu0
    %287 = vmatprep.mubr.f32.mxu0 0.0
    %288 = vmatmul.mubr.f32.gmra.mrb[0].mxu0 %v146
    %v289 = vpop.f32.mrb[0].mxu0
    %v290 = vadd.f32 %v103, %v289
    %v291 = vpop.f32.mrb[0].mxu0
    %292 = vmatprep.mubr.f32.mxu0 0.0
    %293 = vmatmul.mubr.f32.gmra.mrb[0].mxu0 %v149
    %v294 = vpop.f32.mrb[0].mxu0
    %v295 = vadd.f32 %v103, %v294
    %v296 = vpop.f32.mrb[0].mxu0
    %297 = vmatprep.mubr.f32.mxu0 0.0
    %298 = vmatmul.mubr.f32.gmra.mrb[0].mxu0 %v152
    %v299 = vpop.f32.mrb[0].mxu0
    %v300 = vadd.f32 %v103, %v299
    %v301 = vpop.f32.mrb[0].mxu0
    %302 = vdwg.mxu0
    %v303 = vmax.f32 %v225, 0.0
    %v304 = vmax.f32 %v230, 0.0
    %v305 = vmax.f32 %v235, 0.0
    %v306 = vmax.f32 %v240, 0.0
    %v307 = vmax.f32 %v245, 0.0
    %v308 = vmax.f32 %v250, 0.0
    %v309 = vmax.f32 %v255, 0.0
    %v310 = vmax.f32 %v260, 0.0
    %v311 = vmax.f32 %v265, 0.0
    %v312 = vmax.f32 %v270, 0.0
    %v313 = vmax.f32 %v275, 0.0
    %v314 = vmax.f32 %v280, 0.0
    %v315 = vmax.f32 %v285, 0.0
    %v316 = vmax.f32 %v290, 0.0
    %v317 = vmax.f32 %v295, 0.0
    %v318 = vmax.f32 %v300, 0.0
    %v319 = vld [vmem:[%s3] sm:$0xff]
    %v320 = vld [vmem:[%s3 + $0x8] sm:$0xff]
    %v321 = vld [vmem:[%s3 + $0x10] sm:$0xff]
    %v322 = vld [vmem:[%s3 + $0x18] sm:$0xff]
    %v323 = vld [vmem:[%s4] sm:$0x1]
    %v325 = vlaneseq
    %v326 = vshrl.u32 %v325, 7
    %v327 = vsub.s32 0, %v326
    %v328 = vrot.slane %v323, %v327
    %vm330 = vcmask 261120
    %v332 = vsel %vm330, %v303, 0
    %v335 = vsel %vm330, %v304, 0
    %v338 = vsel %vm330, %v305, 0
    %v341 = vsel %vm330, %v306, 0
    %v344 = vsel %vm330, %v307, 0
    %v347 = vsel %vm330, %v308, 0
    %v350 = vsel %vm330, %v309, 0
    %v353 = vsel %vm330, %v310, 0
    %v356 = vsel %vm330, %v311, 0
    %v359 = vsel %vm330, %v312, 0
    %v362 = vsel %vm330, %v313, 0
    %v365 = vsel %vm330, %v314, 0
    %v368 = vsel %vm330, %v315, 0
    %v371 = vsel %vm330, %v316, 0
    %v374 = vsel %vm330, %v317, 0
    %v377 = vsel %vm330, %v318, 0
    %379 = vmatprep.subr.mxu0 0.0
    %380 = vmatpush1.msra.mxu0 %v319
    %381 = vmatprep.subr.mxu0 0.0
    %382 = vmatpush1.msra.mxu0 %v320
    %383 = vmatprep.subr.mxu0 0.0
    %384 = vmatpush1.msra.mxu0 %v321
    %385 = vmatprep.subr.mxu0 0.0
    %386 = vmatpush1.msra.mxu0 %v322
    %387 = vmatprep.subr.mxu0 0.0
    %388 = vmatpush1.msra.mxu0 0.0
    %389 = vmatprep.subr.mxu0 0.0
    %390 = vmatpush1.msra.mxu0 0.0
    %391 = vmatprep.subr.mxu0 0.0
    %392 = vmatpush1.msra.mxu0 0.0
    %393 = vmatprep.subr.mxu0 0.0
    %394 = vmatpush1.msra.mxu0 0.0
    %395 = vmatprep.subr.mxu0 0.0
    %396 = vmatpush1.msra.mxu0 0.0
    %397 = vmatprep.subr.mxu0 0.0
    %398 = vmatpush1.msra.mxu0 0.0
    %399 = vmatprep.subr.mxu0 0.0
    %400 = vmatpush1.msra.mxu0 0.0
    %401 = vmatprep.subr.mxu0 0.0
    %402 = vmatpush1.msra.mxu0 0.0
    %403 = vmatprep.subr.mxu0 0.0
    %404 = vmatpush1.msra.mxu0 0.0
    %405 = vmatprep.subr.mxu0 0.0
    %406 = vmatpush1.msra.mxu0 0.0
    %407 = vmatprep.subr.mxu0 0.0
    %408 = vmatpush1.msra.mxu0 0.0
    %409 = vmatprep.subr.mxu0 0.0
    %410 = vmatpush1.msra.mxu0 0.0
    %411 = vmatprep.subr.mxu0 0.0
    %412 = vmatpush1.msra.mxu0 0.0
    %413 = vmatprep.subr.mxu0 0.0
    %414 = vmatpush1.msra.mxu0 0.0
    %415 = vmatprep.subr.mxu0 0.0
    %416 = vmatpush1.msra.mxu0 0.0
    %417 = vmatprep.subr.mxu0 0.0
    %418 = vmatpush1.msra.mxu0 0.0
    %419 = vmatprep.subr.mxu0 0.0
    %420 = vmatpush1.msra.mxu0 0.0
    %421 = vmatprep.subr.mxu0 0.0
    %422 = vmatpush1.msra.mxu0 0.0
    %423 = vmatprep.subr.mxu0 0.0
    %424 = vmatpush1.msra.mxu0 0.0
    %425 = vmatprep.subr.mxu0 0.0
    %426 = vmatpush1.msra.mxu0 0.0
    %427 = vmatprep.subr.mxu0 0.0
    %428 = vmatpush1.msra.mxu0 0.0
    %429 = vmatprep.subr.mxu0 0.0
    %430 = vmatpush1.msra.mxu0 0.0
    %431 = vmatprep.subr.mxu0 0.0
    %432 = vmatpush1.msra.mxu0 0.0
    %433 = vmatprep.subr.mxu0 0.0
    %434 = vmatpush1.msra.mxu0 0.0
    %435 = vmatprep.subr.mxu0 0.0
    %436 = vmatpush1.msra.mxu0 0.0
    %437 = vmatprep.subr.mxu0 0.0
    %438 = vmatpush1.msra.mxu0 0.0
    %439 = vmatprep.subr.mxu0 0.0
    %440 = vmatpush1.msra.mxu0 0.0
    %441 = vmatprep.subr.mxu0 0.0
    %442 = vmatpush1.msra.mxu0 0.0
    %443 = vmatprep.mubr.f32.mxu0 0.0
    %444 = vmatmul.mubr.f32.gmra.mrb[0].mxu0 %v332
    %v445 = vpop.f32.mrb[0].mxu0
    %v446 = vadd.f32 %v328, %v445
    %v447 = vpop.f32.mrb[0].mxu0
    %448 = vmatprep.mubr.f32.mxu0 0.0
    %449 = vmatmul.mubr.f32.gmra.mrb[0].mxu0 %v335
    %v450 = vpop.f32.mrb[0].mxu0
    %v451 = vadd.f32 %v328, %v450
    %v452 = vpop.f32.mrb[0].mxu0
    %453 = vmatprep.mubr.f32.mxu0 0.0
    %454 = vmatmul.mubr.f32.gmra.mrb[0].mxu0 %v338
    %v455 = vpop.f32.mrb[0].mxu0
    %v456 = vadd.f32 %v328, %v455
    %v457 = vpop.f32.mrb[0].mxu0
    %458 = vmatprep.mubr.f32.mxu0 0.0
    %459 = vmatmul.mubr.f32.gmra.mrb[0].mxu0 %v341
    %v460 = vpop.f32.mrb[0].mxu0
    %v461 = vadd.f32 %v328, %v460
    %v462 = vpop.f32.mrb[0].mxu0
    %463 = vmatprep.mubr.f32.mxu0 0.0
    %464 = vmatmul.mubr.f32.gmra.mrb[0].mxu0 %v344
    %v465 = vpop.f32.mrb[0].mxu0
    %v466 = vadd.f32 %v328, %v465
    %v467 = vpop.f32.mrb[0].mxu0
    %468 = vmatprep.mubr.f32.mxu0 0.0
    %469 = vmatmul.mubr.f32.gmra.mrb[0].mxu0 %v347
    %v470 = vpop.f32.mrb[0].mxu0
    %v471 = vadd.f32 %v328, %v470
    %v472 = vpop.f32.mrb[0].mxu0
    %473 = vmatprep.mubr.f32.mxu0 0.0
    %474 = vmatmul.mubr.f32.gmra.mrb[0].mxu0 %v350
    %v475 = vpop.f32.mrb[0].mxu0
    %v476 = vadd.f32 %v328, %v475
    %v477 = vpop.f32.mrb[0].mxu0
    %478 = vmatprep.mubr.f32.mxu0 0.0
    %479 = vmatmul.mubr.f32.gmra.mrb[0].mxu0 %v353
    %v480 = vpop.f32.mrb[0].mxu0
    %v481 = vadd.f32 %v328, %v480
    %v482 = vpop.f32.mrb[0].mxu0
    %483 = vmatprep.mubr.f32.mxu0 0.0
    %484 = vmatmul.mubr.f32.gmra.mrb[0].mxu0 %v356
    %v485 = vpop.f32.mrb[0].mxu0
    %v486 = vadd.f32 %v328, %v485
    %v487 = vpop.f32.mrb[0].mxu0
    %488 = vmatprep.mubr.f32.mxu0 0.0
    %489 = vmatmul.mubr.f32.gmra.mrb[0].mxu0 %v359
    %v490 = vpop.f32.mrb[0].mxu0
    %v491 = vadd.f32 %v328, %v490
    %v492 = vpop.f32.mrb[0].mxu0
    %493 = vmatprep.mubr.f32.mxu0 0.0
    %494 = vmatmul.mubr.f32.gmra.mrb[0].mxu0 %v362
    %v495 = vpop.f32.mrb[0].mxu0
    %v496 = vadd.f32 %v328, %v495
    %v497 = vpop.f32.mrb[0].mxu0
    %498 = vmatprep.mubr.f32.mxu0 0.0
    %499 = vmatmul.mubr.f32.gmra.mrb[0].mxu0 %v365
    %v500 = vpop.f32.mrb[0].mxu0
    %v501 = vadd.f32 %v328, %v500
    %v502 = vpop.f32.mrb[0].mxu0
    %503 = vmatprep.mubr.f32.mxu0 0.0
    %504 = vmatmul.mubr.f32.gmra.mrb[0].mxu0 %v368
    %v505 = vpop.f32.mrb[0].mxu0
    %v506 = vadd.f32 %v328, %v505
    %v507 = vpop.f32.mrb[0].mxu0
    %508 = vmatprep.mubr.f32.mxu0 0.0
    %509 = vmatmul.mubr.f32.gmra.mrb[0].mxu0 %v371
    %v510 = vpop.f32.mrb[0].mxu0
    %v511 = vadd.f32 %v328, %v510
    %v512 = vpop.f32.mrb[0].mxu0
    %513 = vmatprep.mubr.f32.mxu0 0.0
    %514 = vmatmul.mubr.f32.gmra.mrb[0].mxu0 %v374
    %v515 = vpop.f32.mrb[0].mxu0
    %v516 = vadd.f32 %v328, %v515
    %v517 = vpop.f32.mrb[0].mxu0
    %518 = vmatprep.mubr.f32.mxu0 0.0
    %519 = vmatmul.mubr.f32.gmra.mrb[0].mxu0 %v377
    %v520 = vpop.f32.mrb[0].mxu0
    %v521 = vadd.f32 %v328, %v520
    %v522 = vpop.f32.mrb[0].mxu0
    %523 = vdwg.mxu0
    %v524 = vmax.f32 %v446, 0.0
    %v525 = vmax.f32 %v451, 0.0
    %v526 = vmax.f32 %v456, 0.0
    %v527 = vmax.f32 %v461, 0.0
    %v528 = vmax.f32 %v466, 0.0
    %v529 = vmax.f32 %v471, 0.0
    %v530 = vmax.f32 %v476, 0.0
    %v531 = vmax.f32 %v481, 0.0
    %v532 = vmax.f32 %v486, 0.0
    %v533 = vmax.f32 %v491, 0.0
    %v534 = vmax.f32 %v496, 0.0
    %v535 = vmax.f32 %v501, 0.0
    %v536 = vmax.f32 %v506, 0.0
    %v537 = vmax.f32 %v511, 0.0
    %v538 = vmax.f32 %v516, 0.0
    %v539 = vmax.f32 %v521, 0.0
    %540 = vxpose.xlu0.b32.start [1/16] %v524, 128
    %541 = vxpose.xlu0.b32.cont [2/16] %v525, 128
    %542 = vxpose.xlu0.b32.cont [3/16] %v526, 128
    %543 = vxpose.xlu0.b32.cont [4/16] %v527, 128
    %544 = vxpose.xlu0.b32.cont [5/16] %v528, 128
    %545 = vxpose.xlu0.b32.cont [6/16] %v529, 128
    %546 = vxpose.xlu0.b32.cont [7/16] %v530, 128
    %547 = vxpose.xlu0.b32.cont [8/16] %v531, 128
    %548 = vxpose.xlu0.b32.cont [9/16] %v532, 128
    %549 = vxpose.xlu0.b32.cont [10/16] %v533, 128
    %550 = vxpose.xlu0.b32.cont [11/16] %v534, 128
    %551 = vxpose.xlu0.b32.cont [12/16] %v535, 128
    %552 = vxpose.xlu0.b32.cont [13/16] %v536, 128
    %553 = vxpose.xlu0.b32.cont [14/16] %v537, 128
    %554 = vxpose.xlu0.b32.cont [15/16] %v538, 128
    %555 = vxpose.xlu0.b32.end [16/16] %v539, 128
    %v556 = vpop.trf.xlu0
    %v557 = vpop.trf.xlu0
    %v558 = vpop.trf.xlu0
    %v559 = vpop.trf.xlu0
    %v560 = vpop.trf.xlu0
    %v561 = vpop.trf.xlu0
    %v562 = vpop.trf.xlu0
    %v563 = vpop.trf.xlu0
    %v564 = vpop.trf.xlu0
    %v565 = vpop.trf.xlu0
    %v566 = vpop.trf.xlu0
    %v567 = vpop.trf.xlu0
    %v568 = vpop.trf.xlu0
    %v569 = vpop.trf.xlu0
    %v570 = vpop.trf.xlu0
    %v571 = vpop.trf.xlu0
    %v572 = vld [vmem:[%s5] sm:$0xff]
    %v573 = vld [vmem:[%s5 + $0x8] sm:$0xff]
    %v574 = vld [vmem:[%s5 + $0x10] sm:$0xff]
    %v575 = vld [vmem:[%s5 + $0x18] sm:$0xff]
    %577 = vset.pattern.permute.xlu0 0
    %578 = vperm.xlu0 %577, %v572
    %v579 = vpop.permute.xlu0 %578
    %582 = vset.pattern.permute.xlu0 0
    %583 = vperm.xlu0 %582, %v573
    %v584 = vpop.permute.xlu0 %583
    %587 = vset.pattern.permute.xlu0 0
    %588 = vperm.xlu0 %587, %v574
    %v589 = vpop.permute.xlu0 %588
    %592 = vset.pattern.permute.xlu0 0
    %593 = vperm.xlu0 %592, %v575
    %v594 = vpop.permute.xlu0 %593
    %v596 = vmul.f32 %v556, %v579
    %v597 = vmul.f32 %v557, %v584
    %v598 = vmul.f32 %v558, %v589
    %v599 = vmul.f32 %v559, %v594
    %v600 = vadd.f32 %v596, %v597
    %v601 = vadd.f32 %v600, %v598
    %v602 = vadd.f32 %v601, %v599
    %v603 = vrot.slane %v602, 4
    %v604 = vadd.f32 %v602, %v603
    %v605 = vrot.slane %v604, 2
    %v606 = vadd.f32 %v604, %v605
    %v607 = vrot.slane %v606, 1
    %v608 = vadd.f32 %v606, %v607
    %v609 = vld [vmem:[#allocation2] sm:$0x1]
    %611 = vset.pattern.permute.xlu0 0
    %612 = vperm.xlu0 %611, %v609
    %v613 = vpop.permute.xlu0 %612
    %v615 = vlaneseq
    %v616 = vshrl.u32 %v615, 7
    %v617 = vsub.s32 0, %v616
    %v618 = vrot.slane %v613, %v617
    %v619 = vadd.f32 %v608, %v618
    %620 = vst [vmem:[#allocation3] sm:$0x1] %v619
    // Predicated region
    $region30: #{tpu_custom_call.1} parent=1 // pred_check
      _
    $region31: #{tpu_custom_call.1} parent=1 // pred_check_branch
      %622 = sbr.rel (0) target = $region33
    $region32: #{tpu_custom_call.1} parent=1 // pred_region
      %s624 = ssub.s32 16, 16
      %625 = vsyncadd [#allocation4], %s624
      %s627 = sshll.u32 [#allocation3], 4
      %s628 = int_to_ptr.vmem [resolvable:$true] %s627
      %630 = dma.vmem_to_hbm [thread:$0]  %s628, 16, %s7, [#allocation4]
    $region33: #{tpu_custom_call.1} parent=1 // pred_fallthru
      _
    // Predicated region
    $region34: #{tpu_custom_call.1} parent=1 // pred_check
      _
    $region35: #{tpu_custom_call.1} parent=1 // pred_check_branch
      %632 = sbr.rel (0) target = $region37
    $region36: #{tpu_custom_call.1} parent=1 // pred_region
      %633 = dma.done [#allocation4], 16
    $region37: #{tpu_custom_call.1} parent=1 // pred_fallthru
      _
    %634 = vsyncpa [#allocation4], 1

</llo_original>
